<compile_context>
chip_gen: v5e
topology: v5e:2x2
jax: 0.10.0
libtpu: 0.0.40
codegen_flags: <defaults>
</compile_context>

<pallas_src>
import functools

import jax
import jax.numpy as jnp
from jax.experimental import pallas as pl
from jax.experimental.pallas import tpu as pltpu


_LANES = 128
_SUBLANES = 8


def _round_up(x, m):
    return ((x + m - 1) // m) * m


def _dice_partials_kernel(x_ref, gt_ref, out_ref, acc_pg, acc_p1, acc_gt,
                          *, n_valid, tile_r, steps, apply_sigmoid):
    # x_ref / gt_ref: (tile_r, 128) dense slabs.
    # out_ref:        (1, 24, 128) per-chunk partial sums (PG | sum_p1 | sum_gt).
    # acc_*:          (8, 128) f32 VMEM accumulators (persist across the inner axis).
    j = pl.program_id(0)          # chunk / core axis ("parallel")
    i = pl.program_id(1)          # streaming axis   ("arbitrary")

    @pl.when(i == 0)
    def _init():
        acc_pg[...] = jnp.zeros_like(acc_pg)
        acc_p1[...] = jnp.zeros_like(acc_p1)
        acc_gt[...] = jnp.zeros_like(acc_gt)

    x = x_ref[...].astype(jnp.float32)        # (tile_r, 128)
    gt = gt_ref[...].astype(jnp.float32)      # (tile_r, 128)

    if apply_sigmoid:
        # softmax(dim=classes)[:, 1] for C == 2  ==  sigmoid(logit1 - logit0).
        p1 = 1.0 / (1.0 + jnp.exp(-x))
    else:
        p1 = x                                # already a probability (C > 2 path)

    def _accumulate(p1v, gtv):
        k = tile_r // _SUBLANES
        # Fold each (tile_r, 128) term to a single (8, 128) vreg with pure VPU
        # adds, then one vreg RMW per quantity (keeps vst traffic minimal).
        acc_pg[...] += jnp.sum((p1v * gtv).reshape(k, _SUBLANES, _LANES), axis=0)
        acc_p1[...] += jnp.sum(p1v.reshape(k, _SUBLANES, _LANES), axis=0)
        acc_gt[...] += jnp.sum(gtv.reshape(k, _SUBLANES, _LANES), axis=0)

    block_elems = tile_r * _LANES
    block_start = (j * steps + i) * block_elems        # logical (unclamped) offset
    fully_valid = block_start + block_elems <= n_valid

    @pl.when(fully_valid)
    def _steady():
        _accumulate(p1, gt)

    @pl.when(jnp.logical_not(fully_valid))
    def _tail():
        # Mask both p1 and gt: pad / out-of-bounds lanes must not contribute.
        row = jax.lax.broadcasted_iota(jnp.int32, (tile_r, _LANES), 0)
        lane = jax.lax.broadcasted_iota(jnp.int32, (tile_r, _LANES), 1)
        valid = (block_start + row * _LANES + lane) < n_valid
        _accumulate(jnp.where(valid, p1, 0.0), jnp.where(valid, gt, 0.0))

    @pl.when(i == pl.num_programs(1) - 1)
    def _finalize():
        out_ref[0, 0:8, :] = acc_pg[...]
        out_ref[0, 8:16, :] = acc_p1[...]
        out_ref[0, 16:24, :] = acc_gt[...]


def dice_loss(pred, gt_labels, *, beta, tile_rows=2048, num_chunks=2):
    """JAX/Pallas equivalent of dice_loss.forward(pred, GT_labels).

    pred:      (N, C) logits (C >= 2; class 1 is the positive class).
    gt_labels: (N,) binary labels (any int/bool/float dtype).
    """
    n, c = pred.shape
    assert c >= 2, "dice_loss expects at least 2 classes (uses softmax[:, 1])"

    # Build lane-dense slabs.  C == 2 fast path: single delta slab; C > 2:
    # p1 is computed by one fused wrapper softmax and streamed directly.
    if c == 2:
        x = (pred[:, 1] - pred[:, 0]).astype(jnp.float32)
        apply_sigmoid = True
    else:
        x = jax.nn.softmax(pred.astype(jnp.float32), axis=1)[:, 1]
        apply_sigmoid = False
    gt = gt_labels.reshape(-1).astype(jnp.float32)

    # Pad to a whole number of (8, 128) tiles (at most 1023 extra elements;
    # fused with the delta/cast above) and reshape to dense (rows, 128) slabs.
    rows = _round_up(pl.cdiv(n, _LANES), _SUBLANES)
    n_pad = rows * _LANES
    if n_pad != n:
        x = jnp.pad(x, (0, n_pad - n))
        gt = jnp.pad(gt, (0, n_pad - n))
    x = x.reshape(rows, _LANES)
    gt = gt.reshape(rows, _LANES)

    # Row tile: multiple of 8, clamped to the slab.  Default 2048 rows
    # (~1 MiB f32 per input per step; ~4 MiB double-buffered total).
    tile_r = min(_round_up(max(int(tile_rows), _SUBLANES), _SUBLANES), rows)
    total_blocks = pl.cdiv(rows, tile_r)
    n_chunks = max(1, min(int(num_chunks), total_blocks))
    steps = pl.cdiv(total_blocks, n_chunks)

    def _in_index(j, i):
        # Clamp so logical block ids past the slab re-read the last block
        # (their contribution is fully masked in-kernel via block_start).
        return (jnp.minimum(j * steps + i, total_blocks - 1), 0)

    partials = pl.pallas_call(
        functools.partial(
            _dice_partials_kernel,
            n_valid=n,
            tile_r=tile_r,
            steps=steps,
            apply_sigmoid=apply_sigmoid,
        ),
        out_shape=jax.ShapeDtypeStruct((n_chunks, 3 * _SUBLANES, _LANES),
                                       jnp.float32),
        grid=(n_chunks, steps),
        in_specs=[
            pl.BlockSpec((tile_r, _LANES), _in_index),
            pl.BlockSpec((tile_r, _LANES), _in_index),
        ],
        out_specs=pl.BlockSpec((1, 3 * _SUBLANES, _LANES),
                               lambda j, i: (j, 0, 0)),
        scratch_shapes=[
            pltpu.VMEM((_SUBLANES, _LANES), jnp.float32),   # partial p1*gt
            pltpu.VMEM((_SUBLANES, _LANES), jnp.float32),   # partial p1
            pltpu.VMEM((_SUBLANES, _LANES), jnp.float32),   # partial gt
        ],
        compiler_params=pltpu.CompilerParams(
            dimension_semantics=("parallel", "arbitrary"),
        ),
    )(x, gt)

    # Tiny epilogue over n_chunks * 3 vregs (negligible vs the streamed input).
    sums = jnp.sum(partials.reshape(n_chunks, 3, _SUBLANES, _LANES),
                   axis=(0, 2, 3))
    PG, sum_p1, sum_gt = sums[0], sums[1], sums[2]
    G_P = sum_gt - PG          # sum((1 - p1) * gt)
    P_G = sum_p1 - PG          # sum(p1 * (1 - gt))
    b2 = float(beta) ** 2
    dice = (1.0 + b2) * PG / ((1.0 + b2) * PG + b2 * G_P + P_G)
    return -dice


def dice_loss_ref(pred, gt_labels, *, beta):
    """Pure-JAX reference (mirrors the PyTorch forward)."""
    pred_norm = jax.nn.softmax(pred.astype(jnp.float32), axis=1)[:, 1]
    gt = gt_labels.astype(jnp.float32)
    PG = jnp.sum(pred_norm * gt)
    G_P = jnp.sum((1.0 - pred_norm) * gt)
    P_G = jnp.sum(pred_norm * (1.0 - gt))
    b2 = float(beta) ** 2
    dice = (1.0 + b2) * PG / ((1.0 + b2) * PG + b2 * G_P + P_G)
    return -dice


if __name__ == "__main__":
    # Config from the module's __init__ (deterministic, in-script).
    config = {"dice_beta": 1.0}

    key = jax.random.PRNGKey(0)
    k1, k2, k3, k4 = jax.random.split(key, 4)

    # Case 1: binary logits; N not a multiple of 128; tiny row tiles force a
    # multi-step / multi-chunk grid (accumulators, tail mask, clamped OOB
    # chunk block all exercised).
    N1 = 5000
    pred1 = jax.random.normal(k1, (N1, 2), dtype=jnp.float32)
    gt1 = jax.random.bernoulli(k2, p=0.5, shape=(N1,)).astype(jnp.int32)
    out1 = jax.block_until_ready(
        dice_loss(pred1, gt1, beta=config["dice_beta"],
                  tile_rows=8, num_chunks=2))
    ref1 = dice_loss_ref(pred1, gt1, beta=config["dice_beta"])
    assert jnp.allclose(out1, ref1, rtol=1e-5, atol=1e-5), (out1, ref1)

    # Case 2: default tiling, small slide-level batch (single block + tail mask).
    N2 = 1000
    pred2 = jax.random.normal(k3, (N2, 2), dtype=jnp.float32)
    gt2 = jax.random.bernoulli(k4, p=0.3, shape=(N2,)).astype(jnp.int32)
    out2 = jax.block_until_ready(
        dice_loss(pred2, gt2, beta=config["dice_beta"]))
    ref2 = dice_loss_ref(pred2, gt2, beta=config["dice_beta"])
    assert jnp.allclose(out2, ref2, rtol=1e-5, atol=1e-5), (out2, ref2)

    # Case 3: C > 2 general path (wrapper softmax; kernel streams p1 directly).
    N3 = 777
    pred3 = jax.random.normal(k1, (N3, 4), dtype=jnp.float32)
    gt3 = jax.random.bernoulli(k2, p=0.5, shape=(N3,)).astype(jnp.int32)
    out3 = jax.block_until_ready(
        dice_loss(pred3, gt3, beta=config["dice_beta"]))
    ref3 = dice_loss_ref(pred3, gt3, beta=config["dice_beta"])
    assert jnp.allclose(out3, ref3, rtol=1e-5, atol=1e-5), (out3, ref3)

    print("KERNEL_OK")
</pallas_src>

<mosaic_0001>
module attributes {stable_mosaic.version = 11 : i64} {
  func.func @_dice_partials_kernel(%arg0: i32, %arg1: i32, %arg2: memref<8x128xf32, #tpu.memory_space<vmem>>, %arg3: memref<8x128xf32, #tpu.memory_space<vmem>>, %arg4: memref<1x24x128xf32, #tpu.memory_space<vmem>>, %arg5: memref<8x128xf32, #tpu.memory_space<vmem>>, %arg6: memref<8x128xf32, #tpu.memory_space<vmem>>, %arg7: memref<8x128xf32, #tpu.memory_space<vmem>>) attributes {dimension_semantics = [#tpu.dimension_semantics<parallel>, #tpu.dimension_semantics<arbitrary>], iteration_bounds = array<i64: 2, 3>, scalar_prefetch = 0 : i64, scratch_operands = 3 : i64, tpu.core_type = #tpu.core_type<tc>, window_params = [{transform_indices = @transform_0, window_bounds = array<i64: 8, 128>}, {transform_indices = @transform_1, window_bounds = array<i64: 8, 128>}, {transform_indices = @transform_2, window_bounds = array<i64: 1, 24, 128>}]} {
    %c0_i32 = arith.constant 0 : i32
    %0 = arith.cmpi eq, %arg1, %c0_i32 : i32
    %1 = arith.extui %0 : i1 to i32
    %c0_i32_0 = arith.constant 0 : i32
    %2 = arith.cmpi ne, %1, %c0_i32_0 : i32
    scf.if %2 {
      %cst_10 = arith.constant 0.000000e+00 : f32
      %25 = vector.broadcast %cst_10 : f32 to vector<8x128xf32>
      %c0_11 = arith.constant 0 : index
      %c0_12 = arith.constant 0 : index
      %26 = vector.load %arg5[%c0_11, %c0_12] : memref<8x128xf32, #tpu.memory_space<vmem>>, vector<8x128xf32>
      tpu.vector_store %arg5[%c0_11, %c0_12], %25 {strides = array<i32>} : memref<8x128xf32, #tpu.memory_space<vmem>>, vector<8x128xf32>,
      %cst_13 = arith.constant 0.000000e+00 : f32
      %27 = vector.broadcast %cst_13 : f32 to vector<8x128xf32>
      %c0_14 = arith.constant 0 : index
      %c0_15 = arith.constant 0 : index
      %28 = vector.load %arg6[%c0_14, %c0_15] : memref<8x128xf32, #tpu.memory_space<vmem>>, vector<8x128xf32>
      tpu.vector_store %arg6[%c0_14, %c0_15], %27 {strides = array<i32>} : memref<8x128xf32, #tpu.memory_space<vmem>>, vector<8x128xf32>,
      %cst_16 = arith.constant 0.000000e+00 : f32
      %29 = vector.broadcast %cst_16 : f32 to vector<8x128xf32>
      %c0_17 = arith.constant 0 : index
      %c0_18 = arith.constant 0 : index
      %30 = vector.load %arg7[%c0_17, %c0_18] : memref<8x128xf32, #tpu.memory_space<vmem>>, vector<8x128xf32>
      tpu.vector_store %arg7[%c0_17, %c0_18], %29 {strides = array<i32>} : memref<8x128xf32, #tpu.memory_space<vmem>>, vector<8x128xf32>,
    } else {
    }
    %c0 = arith.constant 0 : index
    %c0_1 = arith.constant 0 : index
    %3 = vector.load %arg2[%c0, %c0_1] : memref<8x128xf32, #tpu.memory_space<vmem>>, vector<8x128xf32>
    %c0_2 = arith.constant 0 : index
    %c0_3 = arith.constant 0 : index
    %4 = vector.load %arg3[%c0_2, %c0_3] : memref<8x128xf32, #tpu.memory_space<vmem>>, vector<8x128xf32>
    %cst = arith.constant 0.000000e+00 : f32
    %5 = vector.broadcast %cst : f32 to vector<8x128xf32>
    %6 = arith.subf %5, %3 : vector<8x128xf32>
    %7 = math.exp %6 : vector<8x128xf32>
    %cst_4 = arith.constant 1.000000e+00 : f32
    %8 = vector.broadcast %cst_4 : f32 to vector<8x128xf32>
    %9 = arith.addf %8, %7 : vector<8x128xf32>
    %cst_5 = arith.constant 1.000000e+00 : f32
    %10 = vector.broadcast %cst_5 : f32 to vector<8x128xf32>
    %11 = arith.divf %10, %9 : vector<8x128xf32>
    %c3_i32 = arith.constant 3 : i32
    %12 = arith.muli %arg0, %c3_i32 : i32
    %13 = arith.addi %12, %arg1 : i32
    %c1024_i32 = arith.constant 1024 : i32
    %14 = arith.muli %13, %c1024_i32 : i32
    %c1024_i32_6 = arith.constant 1024 : i32
    %15 = arith.addi %14, %c1024_i32_6 : i32
    %c5000_i32 = arith.constant 5000 : i32
    %16 = arith.cmpi sle, %15, %c5000_i32 : i32
    %17 = arith.extui %16 : i1 to i32
    %c0_i32_7 = arith.constant 0 : i32
    %18 = arith.cmpi ne, %17, %c0_i32_7 : i32
    scf.if %18 {
      %c0_10 = arith.constant 0 : index
      %c0_11 = arith.constant 0 : index
      %25 = vector.load %arg5[%c0_10, %c0_11] : memref<8x128xf32, #tpu.memory_space<vmem>>, vector<8x128xf32>
      %26 = arith.mulf %11, %4 : vector<8x128xf32>
      %27 = vector.shape_cast %26 : vector<8x128xf32> to vector<1x8x128xf32>
      %cst_12 = arith.constant dense<0.000000e+00> : vector<8x128xf32>
      %28 = vector.multi_reduction <add>, %27, %cst_12 [0] : vector<1x8x128xf32> to vector<8x128xf32>
      %29 = arith.addf %25, %28 : vector<8x128xf32>
      %c0_13 = arith.constant 0 : index
      %c0_14 = arith.constant 0 : index
      %30 = vector.load %arg5[%c0_13, %c0_14] : memref<8x128xf32, #tpu.memory_space<vmem>>, vector<8x128xf32>
      tpu.vector_store %arg5[%c0_13, %c0_14], %29 {strides = array<i32>} : memref<8x128xf32, #tpu.memory_space<vmem>>, vector<8x128xf32>,
      %c0_15 = arith.constant 0 : index
      %c0_16 = arith.constant 0 : index
      %31 = vector.load %arg6[%c0_15, %c0_16] : memref<8x128xf32, #tpu.memory_space<vmem>>, vector<8x128xf32>
      %32 = vector.shape_cast %11 : vector<8x128xf32> to vector<1x8x128xf32>
      %cst_17 = arith.constant dense<0.000000e+00> : vector<8x128xf32>
      %33 = vector.multi_reduction <add>, %32, %cst_17 [0] : vector<1x8x128xf32> to vector<8x128xf32>
      %34 = arith.addf %31, %33 : vector<8x128xf32>
      %c0_18 = arith.constant 0 : index
      %c0_19 = arith.constant 0 : index
      %35 = vector.load %arg6[%c0_18, %c0_19] : memref<8x128xf32, #tpu.memory_space<vmem>>, vector<8x128xf32>
      tpu.vector_store %arg6[%c0_18, %c0_19], %34 {strides = array<i32>} : memref<8x128xf32, #tpu.memory_space<vmem>>, vector<8x128xf32>,
      %c0_20 = arith.constant 0 : index
      %c0_21 = arith.constant 0 : index
      %36 = vector.load %arg7[%c0_20, %c0_21] : memref<8x128xf32, #tpu.memory_space<vmem>>, vector<8x128xf32>
      %37 = vector.shape_cast %4 : vector<8x128xf32> to vector<1x8x128xf32>
      %cst_22 = arith.constant dense<0.000000e+00> : vector<8x128xf32>
      %38 = vector.multi_reduction <add>, %37, %cst_22 [0] : vector<1x8x128xf32> to vector<8x128xf32>
      %39 = arith.addf %36, %38 : vector<8x128xf32>
      %c0_23 = arith.constant 0 : index
      %c0_24 = arith.constant 0 : index
      %40 = vector.load %arg7[%c0_23, %c0_24] : memref<8x128xf32, #tpu.memory_space<vmem>>, vector<8x128xf32>
      tpu.vector_store %arg7[%c0_23, %c0_24], %39 {strides = array<i32>} : memref<8x128xf32, #tpu.memory_space<vmem>>, vector<8x128xf32>,
    } else {
    }
    %true = arith.constant true
    %19 = arith.xori %16, %true : i1
    %20 = arith.extui %19 : i1 to i32
    %c0_i32_8 = arith.constant 0 : i32
    %21 = arith.cmpi ne, %20, %c0_i32_8 : i32
    scf.if %21 {
      %25 = tpu.iota {dimensions = array<i32: 0>} : vector<8x128xi32>
      %26 = tpu.iota {dimensions = array<i32: 1>} : vector<8x128xi32>
      %c128_i32 = arith.constant 128 : i32
      %27 = vector.broadcast %c128_i32 : i32 to vector<8x128xi32>
      %28 = arith.muli %25, %27 : vector<8x128xi32>
      %29 = vector.broadcast %14 : i32 to vector<8x128xi32>
      %30 = arith.addi %29, %28 : vector<8x128xi32>
      %31 = arith.addi %30, %26 : vector<8x128xi32>
      %c5000_i32_10 = arith.constant 5000 : i32
      %32 = vector.broadcast %c5000_i32_10 : i32 to vector<8x128xi32>
      %33 = arith.cmpi slt, %31, %32 : vector<8x128xi32>
      %cst_11 = arith.constant 0.000000e+00 : f32
      %34 = vector.broadcast %cst_11 : f32 to vector<8x128xf32>
      %35 = arith.select %33, %11, %34 : vector<8x128xi1>, vector<8x128xf32>
      %cst_12 = arith.constant 0.000000e+00 : f32
      %36 = vector.broadcast %cst_12 : f32 to vector<8x128xf32>
      %37 = arith.select %33, %4, %36 : vector<8x128xi1>, vector<8x128xf32>
      %c0_13 = arith.constant 0 : index
      %c0_14 = arith.constant 0 : index
      %38 = vector.load %arg5[%c0_13, %c0_14] : memref<8x128xf32, #tpu.memory_space<vmem>>, vector<8x128xf32>
      %39 = arith.mulf %35, %37 : vector<8x128xf32>
      %40 = vector.shape_cast %39 : vector<8x128xf32> to vector<1x8x128xf32>
      %cst_15 = arith.constant dense<0.000000e+00> : vector<8x128xf32>
      %41 = vector.multi_reduction <add>, %40, %cst_15 [0] : vector<1x8x128xf32> to vector<8x128xf32>
      %42 = arith.addf %38, %41 : vector<8x128xf32>
      %c0_16 = arith.constant 0 : index
      %c0_17 = arith.constant 0 : index
      %43 = vector.load %arg5[%c0_16, %c0_17] : memref<8x128xf32, #tpu.memory_space<vmem>>, vector<8x128xf32>
      tpu.vector_store %arg5[%c0_16, %c0_17], %42 {strides = array<i32>} : memref<8x128xf32, #tpu.memory_space<vmem>>, vector<8x128xf32>,
      %c0_18 = arith.constant 0 : index
      %c0_19 = arith.constant 0 : index
      %44 = vector.load %arg6[%c0_18, %c0_19] : memref<8x128xf32, #tpu.memory_space<vmem>>, vector<8x128xf32>
      %45 = vector.shape_cast %35 : vector<8x128xf32> to vector<1x8x128xf32>
      %cst_20 = arith.constant dense<0.000000e+00> : vector<8x128xf32>
      %46 = vector.multi_reduction <add>, %45, %cst_20 [0] : vector<1x8x128xf32> to vector<8x128xf32>
      %47 = arith.addf %44, %46 : vector<8x128xf32>
      %c0_21 = arith.constant 0 : index
      %c0_22 = arith.constant 0 : index
      %48 = vector.load %arg6[%c0_21, %c0_22] : memref<8x128xf32, #tpu.memory_space<vmem>>, vector<8x128xf32>
      tpu.vector_store %arg6[%c0_21, %c0_22], %47 {strides = array<i32>} : memref<8x128xf32, #tpu.memory_space<vmem>>, vector<8x128xf32>,
      %c0_23 = arith.constant 0 : index
      %c0_24 = arith.constant 0 : index
      %49 = vector.load %arg7[%c0_23, %c0_24] : memref<8x128xf32, #tpu.memory_space<vmem>>, vector<8x128xf32>
      %50 = vector.shape_cast %37 : vector<8x128xf32> to vector<1x8x128xf32>
      %cst_25 = arith.constant dense<0.000000e+00> : vector<8x128xf32>
      %51 = vector.multi_reduction <add>, %50, %cst_25 [0] : vector<1x8x128xf32> to vector<8x128xf32>
      %52 = arith.addf %49, %51 : vector<8x128xf32>
      %c0_26 = arith.constant 0 : index
      %c0_27 = arith.constant 0 : index
      %53 = vector.load %arg7[%c0_26, %c0_27] : memref<8x128xf32, #tpu.memory_space<vmem>>, vector<8x128xf32>
      tpu.vector_store %arg7[%c0_26, %c0_27], %52 {strides = array<i32>} : memref<8x128xf32, #tpu.memory_space<vmem>>, vector<8x128xf32>,
    } else {
    }
    %c2_i32 = arith.constant 2 : i32
    %22 = arith.cmpi eq, %arg1, %c2_i32 : i32
    %23 = arith.extui %22 : i1 to i32
    %c0_i32_9 = arith.constant 0 : i32
    %24 = arith.cmpi ne, %23, %c0_i32_9 : i32
    scf.if %24 {
      %c0_10 = arith.constant 0 : index
      %c0_11 = arith.constant 0 : index
      %25 = vector.load %arg5[%c0_10, %c0_11] : memref<8x128xf32, #tpu.memory_space<vmem>>, vector<8x128xf32>
      %c0_12 = arith.constant 0 : index
      %c0_13 = arith.constant 0 : index
      %c0_14 = arith.constant 0 : index
      %26 = vector.load %arg4[%c0_12, %c0_13, %c0_14] : memref<1x24x128xf32, #tpu.memory_space<vmem>>, vector<1x8x128xf32>
      %27 = vector.shape_cast %26 : vector<1x8x128xf32> to vector<8x128xf32>
      %28 = vector.shape_cast %25 : vector<8x128xf32> to vector<1x8x128xf32>
      tpu.vector_store %arg4[%c0_12, %c0_13, %c0_14], %28 {strides = array<i32>} : memref<1x24x128xf32, #tpu.memory_space<vmem>>, vector<1x8x128xf32>,
      %c0_15 = arith.constant 0 : index
      %c0_16 = arith.constant 0 : index
      %29 = vector.load %arg6[%c0_15, %c0_16] : memref<8x128xf32, #tpu.memory_space<vmem>>, vector<8x128xf32>
      %c0_17 = arith.constant 0 : index
      %c8 = arith.constant 8 : index
      %c0_18 = arith.constant 0 : index
      %30 = vector.load %arg4[%c0_17, %c8, %c0_18] : memref<1x24x128xf32, #tpu.memory_space<vmem>>, vector<1x8x128xf32>
      %31 = vector.shape_cast %30 : vector<1x8x128xf32> to vector<8x128xf32>
      %32 = vector.shape_cast %29 : vector<8x128xf32> to vector<1x8x128xf32>
      tpu.vector_store %arg4[%c0_17, %c8, %c0_18], %32 {strides = array<i32>} : memref<1x24x128xf32, #tpu.memory_space<vmem>>, vector<1x8x128xf32>,
      %c0_19 = arith.constant 0 : index
      %c0_20 = arith.constant 0 : index
      %33 = vector.load %arg7[%c0_19, %c0_20] : memref<8x128xf32, #tpu.memory_space<vmem>>, vector<8x128xf32>
      %c0_21 = arith.constant 0 : index
      %c16 = arith.constant 16 : index
      %c0_22 = arith.constant 0 : index
      %34 = vector.load %arg4[%c0_21, %c16, %c0_22] : memref<1x24x128xf32, #tpu.memory_space<vmem>>, vector<1x8x128xf32>
      %35 = vector.shape_cast %34 : vector<1x8x128xf32> to vector<8x128xf32>
      %36 = vector.shape_cast %33 : vector<8x128xf32> to vector<1x8x128xf32>
      tpu.vector_store %arg4[%c0_21, %c16, %c0_22], %36 {strides = array<i32>} : memref<1x24x128xf32, #tpu.memory_space<vmem>>, vector<1x8x128xf32>,
    } else {
    }
    return
  }
  func.func @transform_0(%arg0: i32, %arg1: i32) -> (i32, i32) {
    %c3_i32 = arith.constant 3 : i32
    %0 = arith.muli %arg0, %c3_i32 : i32
    %1 = arith.addi %0, %arg1 : i32
    %c4_i32 = arith.constant 4 : i32
    %2 = arith.minsi %1, %c4_i32 : i32
    %c0_i32 = arith.constant 0 : i32
    %c0_i32_0 = arith.constant 0 : i32
    return %2, %c0_i32 : i32, i32
  }
  func.func @transform_1(%arg0: i32, %arg1: i32) -> (i32, i32) {
    %c3_i32 = arith.constant 3 : i32
    %0 = arith.muli %arg0, %c3_i32 : i32
    %1 = arith.addi %0, %arg1 : i32
    %c4_i32 = arith.constant 4 : i32
    %2 = arith.minsi %1, %c4_i32 : i32
    %c0_i32 = arith.constant 0 : i32
    %c0_i32_0 = arith.constant 0 : i32
    return %2, %c0_i32 : i32, i32
  }
  func.func @transform_2(%arg0: i32, %arg1: i32) -> (i32, i32, i32) {
    %c0_i32 = arith.constant 0 : i32
    %c0_i32_0 = arith.constant 0 : i32
    %c0_i32_1 = arith.constant 0 : i32
    return %arg0, %c0_i32, %c0_i32_0 : i32, i32, i32
  }
}

</mosaic_0001>

<llo_original>
// kernel: tpu_custom_call.1
$region0: #{tpu_custom_call.1}
  #allocation0 [shape = 'u32[]', space=smem, size = 0x4, offset = 0x4, fixed_abs, tag = 'smem constant byte address 0x4 - core index']
  #allocation1 [shape = 'u32[72,128]{1,0:T(1,128)}', space=vmem, size = 0x9000, scoped, tag = 'internal scratch']
  #allocation2 [shape = 'f32[8,128]{1,0:T(8,128)}', space=vmem, size = 0x1000, scoped, tag = 'scratch operand']
  #allocation3 [shape = 'f32[8,128]{1,0:T(8,128)}', space=vmem, size = 0x1000, scoped, tag = 'scratch operand']
  #allocation4 [shape = 'f32[8,128]{1,0:T(8,128)}', space=vmem, size = 0x1000, scoped, tag = 'scratch operand']
  %s0 = inlined_call_operand.hbm [shape: f32[40,128], index: 0, kind: input, shape index: {}]
  %s1 = inlined_call_operand.hbm [shape: f32[40,128], index: 1, kind: input, shape index: {}]
  %s2 = inlined_call_operand.hbm [shape: f32[2,24,128], index: 2, kind: output, shape index: {}]
  %s3 = sld [smem:[#allocation0]]
  $region65: #{tpu_custom_call.1} parent=0
    _
  %s5 = ssub.s32 1, %s3
  %s6 = scalar_select 0, %s5, %s3
  $region1: #{tpu_custom_call.1} parent=0
    #allocation5 [shape = 'u8[8192]{0}', space=vmem, size = 0x2000, scoped, tag = 'input window, operand 0']
    #allocation6 [shape = 's32[2]{0}', space=sflag, size = 0x8, scoped, tag = 'scoped memory for tpu_custom_call.1']
    #allocation7 [shape = 's32[2]{0}', space=sflag, size = 0x8, scoped, tag = 'scoped memory for tpu_custom_call.1']
    #allocation8 [shape = 'u8[8192]{0}', space=vmem, size = 0x2000, scoped, tag = 'input window, operand 1']
    #allocation9 [shape = 's32[2]{0}', space=sflag, size = 0x8, scoped, tag = 'scoped memory for tpu_custom_call.1']
    #allocation10 [shape = 'u8[24576]{0}', space=vmem, size = 0x6000, scoped, tag = 'output window, operand 0']
    %7 = vsyncpa [#allocation6], 0
    %s8 = scalar_lea.sflag [#allocation6], 1
    %9 = vsyncpa %s8, 0
    %10 = vsyncpa [#allocation9], 0
    %s11 = scalar_lea.sflag [#allocation9], 1
    %12 = vsyncpa %s11, 0
    %13 = vsyncpa [#allocation7], 0
    %s14 = scalar_lea.sflag [#allocation7], 1
    %15 = vsyncpa %s14, 0
    loop: start=0, step=1, limit=8
    $region2: #{tpu_custom_call.1} parent=1 // loop_pre_header
      _
    $region3: #{tpu_custom_call.1} parent=1 // loop_header
      %s17 = sphi 0, %s21
      %p18 = scmp.ge.s32.totalorder %s17, 8
      %s24 = sphi 0, %s36
      %s25 = sphi 0, %s32
      %s26 = sphi 0, %s24
      %s27 = sphi 0, %s25
      %s28 = sphi 0, %s26
      %s29 = sphi 0, %s27
      %s47 = sphi 0, %s49
      %s50 = sphi 0, %s47
      %s51 = sphi 0, %s50
      %s67 = sphi 0, %s51
      %s81 = sphi 0, %s83
      %s84 = sphi 0, %s81
      %s85 = sphi 0, %s84
      %s101 = sphi 0, %s85
      %s107 = sphi 0, %s109
      %s110 = sphi 0, %s107
      %s111 = sphi 0, %s110
      %s127 = sphi 0, %s111
    $region4: #{tpu_custom_call.1} parent=1 // loop_header_branch
      %20 = sbr.rel (%p18) target = $region8
    $region5: #{tpu_custom_call.1} parent=1 // loop_body
      %s22 = ssub.s32 %s17, 1
      %s23 = ssub.s32 %s17, 2
      %s30 = sadd.s32 1, %s25
      %p31 = scmp.ge.s32.totalorder %s30, 3
      %s32 = scalar_select %p31, 0, %s30
      %s33 = sadd.s32 1, %s24
      %s34 = scalar_select %p31, %s33, %s24
      %p35 = scmp.ge.s32.totalorder %s34, 2
      %s36 = scalar_select %p35, 0, %s34
      %s37 = smul.u32 %s24, 3
      %s38 = sadd.s32 %s37, %s25
      %p39 = scmp.lt.s32.totalorder %s38, 4
      %s40 = scalar_select %p39, %s38, 4
      %s41 = smul.u32 %s36, 3
      %s42 = sadd.s32 %s41, %s32
      %p43 = scmp.lt.s32.totalorder %s42, 4
      %s44 = scalar_select %p43, %s42, 4
      %s45 = ssub.s32 %s40, %s44
      %p46 = scmp.eq.s32.totalorder %s45, 0
      %s48 = sadd.s32 %s47, 1
      %s49 = scalar_select %p46, %s47, %s48
      %p52 = pneg %p46
      %p53 = scmp.eq.s32.totalorder %s17, 5
      %p54 = por %p52, %p53
      %p55 = scmp.ne.s32.totalorder %s47, %s50
      %p56 = scmp.eq.s32.totalorder %s17, 0
      %p57 = por %p55, %p56
      %p58 = scmp.ne.s32.totalorder %s47, %s50
      %p59 = scmp.eq.s32.totalorder %s22, 5
      %p60 = por %p58, %p59
      %p61 = scmp.ne.s32.totalorder %s50, %s51
      %p62 = scmp.eq.s32.totalorder %s22, 0
      %p63 = por %p61, %p62
      %p64 = scmp.ne.s32.totalorder %s50, %s51
      %p65 = scmp.eq.s32.totalorder %s23, 5
      %p66 = por %p64, %p65
      %p68 = scmp.ne.s32.totalorder %s51, %s67
      %p69 = scmp.eq.s32.totalorder %s23, 0
      %p70 = por %p68, %p69
      %s71 = smul.u32 %s24, 3
      %s72 = sadd.s32 %s71, %s25
      %p73 = scmp.lt.s32.totalorder %s72, 4
      %s74 = scalar_select %p73, %s72, 4
      %s75 = smul.u32 %s36, 3
      %s76 = sadd.s32 %s75, %s32
      %p77 = scmp.lt.s32.totalorder %s76, 4
      %s78 = scalar_select %p77, %s76, 4
      %s79 = ssub.s32 %s74, %s78
      %p80 = scmp.eq.s32.totalorder %s79, 0
      %s82 = sadd.s32 %s81, 1
      %s83 = scalar_select %p80, %s81, %s82
      %p86 = pneg %p80
      %p87 = scmp.eq.s32.totalorder %s17, 5
      %p88 = por %p86, %p87
      %p89 = scmp.ne.s32.totalorder %s81, %s84
      %p90 = scmp.eq.s32.totalorder %s17, 0
      %p91 = por %p89, %p90
      %p92 = scmp.ne.s32.totalorder %s81, %s84
      %p93 = scmp.eq.s32.totalorder %s22, 5
      %p94 = por %p92, %p93
      %p95 = scmp.ne.s32.totalorder %s84, %s85
      %p96 = scmp.eq.s32.totalorder %s22, 0
      %p97 = por %p95, %p96
      %p98 = scmp.ne.s32.totalorder %s84, %s85
      %p99 = scmp.eq.s32.totalorder %s23, 5
      %p100 = por %p98, %p99
      %p102 = scmp.ne.s32.totalorder %s85, %s101
      %p103 = scmp.eq.s32.totalorder %s23, 0
      %p104 = por %p102, %p103
      %s105 = ssub.s32 %s24, %s36
      %p106 = scmp.eq.s32.totalorder %s105, 0
      %s108 = sadd.s32 %s107, 1
      %s109 = scalar_select %p106, %s107, %s108
      %p112 = pneg %p106
      %p113 = scmp.eq.s32.totalorder %s17, 5
      %p114 = por %p112, %p113
      %p115 = scmp.ne.s32.totalorder %s107, %s110
      %p116 = scmp.eq.s32.totalorder %s17, 0
      %p117 = por %p115, %p116
      %p118 = scmp.ne.s32.totalorder %s107, %s110
      %p119 = scmp.eq.s32.totalorder %s22, 5
      %p120 = por %p118, %p119
      %p121 = scmp.ne.s32.totalorder %s110, %s111
      %p122 = scmp.eq.s32.totalorder %s22, 0
      %p123 = por %p121, %p122
      %p124 = scmp.ne.s32.totalorder %s110, %s111
      %p125 = scmp.eq.s32.totalorder %s23, 5
      %p126 = por %p124, %p125
      %p128 = scmp.ne.s32.totalorder %s111, %s127
      %p129 = scmp.eq.s32.totalorder %s23, 0
      %p130 = por %p128, %p129
      %p131 = scmp.le.s32.totalorder 1, %s17
      %p132 = scmp.lt.s32.totalorder %s17, 7
      %p133 = pnand %p131, %p132
      %p134 = pneg %p133
      // Predicated region
      $region9: #{tpu_custom_call.1} parent=5 // pred_check
        _
      $region10: #{tpu_custom_call.1} parent=5 // pred_check_branch
        %136 = sbr.rel (%p133) target = $region12
      $region11: #{tpu_custom_call.1} parent=5 // pred_region
        %s137 = ssub.s32 %s17, 1
      $region12: #{tpu_custom_call.1} parent=5 // pred_fallthru
        _
      %p138 = scmp.lt.s32.totalorder %s17, 6
      // Predicated region
      $region13: #{tpu_custom_call.1} parent=5 // pred_check
        %p139 = pneg %p138
      $region14: #{tpu_custom_call.1} parent=5 // pred_check_branch
        %141 = sbr.rel (%p139) target = $region16
      $region15: #{tpu_custom_call.1} parent=5 // pred_region
        // Predicated region
        $region17: #{tpu_custom_call.1} parent=15 // pred_check
          %p142 = pneg %p57
        $region18: #{tpu_custom_call.1} parent=15 // pred_check_branch
          %144 = sbr.rel (%p142) target = $region20
        $region19: #{tpu_custom_call.1} parent=15 // pred_region
          %s145 = sand.u32 %s47, 1
          %s146 = scalar_lea.sflag [#allocation6], %s145
          %s147 = sand.u32 %s47, 1
          %s148 = smul.addr %s147, 8
          %s149 = scalar_lea.vmem [#allocation5], %s148
          %s150 = smul.u32 %s24, 3
          %s151 = sadd.s32 %s150, %s25
          %p152 = scmp.lt.s32.totalorder %s151, 4
          %s153 = scalar_select %p152, %s151, 4
          %155 = vsyncadd %s146, 0
          %s156 = smul.addr %s153, 8
          %s157 = scalar_lea.hbm %s0, %s156
          %s159 = sshll.u32 %s157, 4
          %s160 = int_to_ptr.hbm [resolvable:$true] %s159
          %s161 = sshll.u32 %s149, 4
          %s162 = int_to_ptr.vmem [resolvable:$true] %s161
          %164 = dma.hbm_to_vmem [thread:$0]  %s160, 128, %s162, %s146
        $region20: #{tpu_custom_call.1} parent=15 // pred_fallthru
          _
        // Predicated region
        $region21: #{tpu_custom_call.1} parent=15 // pred_check
          %p165 = pneg %p91
        $region22: #{tpu_custom_call.1} parent=15 // pred_check_branch
          %167 = sbr.rel (%p165) target = $region24
        $region23: #{tpu_custom_call.1} parent=15 // pred_region
          %s168 = sand.u32 %s81, 1
          %s169 = scalar_lea.sflag [#allocation9], %s168
          %s170 = sand.u32 %s81, 1
          %s171 = smul.addr %s170, 8
          %s172 = scalar_lea.vmem [#allocation8], %s171
          %s173 = smul.u32 %s24, 3
          %s174 = sadd.s32 %s173, %s25
          %p175 = scmp.lt.s32.totalorder %s174, 4
          %s176 = scalar_select %p175, %s174, 4
          %178 = vsyncadd %s169, 0
          %s179 = smul.addr %s176, 8
          %s180 = scalar_lea.hbm %s1, %s179
          %s182 = sshll.u32 %s180, 4
          %s183 = int_to_ptr.hbm [resolvable:$true] %s182
          %s184 = sshll.u32 %s172, 4
          %s185 = int_to_ptr.vmem [resolvable:$true] %s184
          %187 = dma.hbm_to_vmem [thread:$0]  %s183, 128, %s185, %s169
        $region24: #{tpu_custom_call.1} parent=15 // pred_fallthru
          _
      $region16: #{tpu_custom_call.1} parent=5 // pred_fallthru
        _
      %p188 = scmp.le.s32.totalorder 1, %s17
      %p189 = scmp.lt.s32.totalorder %s17, 7
      %p190 = pnand %p188, %p189
      %p191 = pneg %p190
      // Predicated region
      $region25: #{tpu_custom_call.1} parent=5 // pred_check
        _
      $region26: #{tpu_custom_call.1} parent=5 // pred_check_branch
        %193 = sbr.rel (%p190) target = $region28
      $region27: #{tpu_custom_call.1} parent=5 // pred_region
        %s194 = ssub.s32 %s17, 1
        %s195 = sand.u32 %s50, 1
        %s196 = scalar_lea.sflag [#allocation6], %s195
        %s197 = sand.u32 %s50, 1
        %s198 = smul.addr %s197, 8
        %s199 = scalar_lea.vmem [#allocation5], %s198
        // Predicated region
        $region29: #{tpu_custom_call.1} parent=27 // pred_check
          %p200 = pneg %p63
        $region30: #{tpu_custom_call.1} parent=27 // pred_check_branch
          %202 = sbr.rel (%p200) target = $region32
        $region31: #{tpu_custom_call.1} parent=27 // pred_region
          %204 = dma.done %s196, 128
        $region32: #{tpu_custom_call.1} parent=27 // pred_fallthru
          _
        %s205 = sand.u32 %s84, 1
        %s206 = scalar_lea.sflag [#allocation9], %s205
        %s207 = sand.u32 %s84, 1
        %s208 = smul.addr %s207, 8
        %s209 = scalar_lea.vmem [#allocation8], %s208
        // Predicated region
        $region33: #{tpu_custom_call.1} parent=27 // pred_check
          %p210 = pneg %p97
        $region34: #{tpu_custom_call.1} parent=27 // pred_check_branch
          %212 = sbr.rel (%p210) target = $region36
        $region35: #{tpu_custom_call.1} parent=27 // pred_region
          %214 = dma.done %s206, 128
        $region36: #{tpu_custom_call.1} parent=27 // pred_fallthru
          _
        %s215 = sand.u32 %s50, 1
        %s216 = scalar_lea.sflag [#allocation6], %s215
        %s217 = sand.u32 %s50, 1
        %s218 = smul.addr %s217, 8
        %s219 = scalar_lea.vmem [#allocation5], %s218
        %p220 = pneg %p63
        %p221 = pneg %p60
        %s222 = sand.u32 %s84, 1
        %s223 = scalar_lea.sflag [#allocation9], %s222
        %s224 = sand.u32 %s84, 1
        %s225 = smul.addr %s224, 8
        %s226 = scalar_lea.vmem [#allocation8], %s225
        %p227 = pneg %p97
        %p228 = pneg %p94
        %p229 = pneg %p123
        %p230 = pneg %p120
        %s231 = sand.u32 %s110, 1
        %s232 = scalar_lea.sflag [#allocation7], %s231
        %s233 = sand.u32 %s110, 1
        %s234 = smul.addr %s233, 24
        %s235 = scalar_lea.vmem [#allocation10], %s234
        %s236 = smul.u32 %s26, 3
        %s237 = sadd.s32 %s236, %s27
        %p238 = scmp.lt.s32.totalorder %s237, 4
        %s239 = scalar_select %p238, %s237, 4
        %s240 = smul.u32 %s26, 3
        %s241 = sadd.s32 %s240, %s27
        %p242 = scmp.lt.s32.totalorder %s241, 4
        %s243 = scalar_select %p242, %s241, 4
        %p244 = scmp.eq.s32.totalorder %s27, 0
        // Predicated region
        $region37: #{tpu_custom_call.1} parent=27 // pred_check
          %p245 = pneg %p244
        $region38: #{tpu_custom_call.1} parent=27 // pred_check_branch
          %247 = sbr.rel (%p245) target = $region40
        $region39: #{tpu_custom_call.1} parent=27 // pred_region
          %248 = vst [vmem:[#allocation2] sm:$0xff] 0.0
          %249 = vst [vmem:[#allocation3] sm:$0xff] 0.0
          %250 = vst [vmem:[#allocation4] sm:$0xff] 0.0
        $region40: #{tpu_custom_call.1} parent=27 // pred_fallthru
          _
        %v251 = vld [vmem:[%s199] sm:$0xff]
        %v252 = vld [vmem:[%s209] sm:$0xff]
        %v253 = vsub.f32 0.0, %v251
        %v254 = vmul.f32 %v253, 1.442695
        %v255 = vpow.pop %v254
        %v256 = vadd.f32 %v255, 1.0
        %v257 = vrcp.pop %v256
        %v258 = vmul.f32 %v256, %v257
        %v259 = vsub.f32 1.0, %v258
        %v260 = vmul.f32 %v257, %v259
        %v261 = vadd.f32 %v257, %v260
        %vm262 = vweird.f32 %v256
        %vm263 = vweird.f32 %v257
        %vm264 = vmor %vm262, %vm263
        %v265 = vsel %vm264, %v257, %v261
        %v266 = vand.u32 2147483647, %v256
        %vm267 = vcmp.eq.f32.partialorder %v266, 8.507059e+37
        %v268 = vand.u32 %v256, 2147483648
        %v269 = vor.u32 1.1754944e-38, %v268
        %v270 = vsel %vm267, %v269, %v265
        %v271 = vmul.f32 1.0, %v270
        %s272 = smul.u32 %s26, 3
        %s273 = sadd.s32 %s272, %s27
        %s274 = smul.u32 %s273, 1024
        %s275 = sadd.s32 %s274, 1024
        %p276 = scmp.le.s32.totalorder %s275, 5000
        // Predicated region
        $region41: #{tpu_custom_call.1} parent=27 // pred_check
          %p277 = pneg %p276
        $region42: #{tpu_custom_call.1} parent=27 // pred_check_branch
          %279 = sbr.rel (%p277) target = $region44
        $region43: #{tpu_custom_call.1} parent=27 // pred_region
          %v280 = vld [vmem:[#allocation2] sm:$0xff]
          %v281 = vmul.f32 %v271, %v252
          %v282 = vadd.f32 %v281, 0.0
          %v283 = vadd.f32 %v280, %v282
          %284 = vst [vmem:[#allocation2] sm:$0xff] %v283
          %v285 = vld [vmem:[#allocation3] sm:$0xff]
          %v286 = vadd.f32 %v271, 0.0
          %v287 = vadd.f32 %v285, %v286
          %288 = vst [vmem:[#allocation3] sm:$0xff] %v287
          %v289 = vld [vmem:[#allocation4] sm:$0xff]
          %v290 = vadd.f32 %v252, 0.0
          %v291 = vadd.f32 %v289, %v290
          %292 = vst [vmem:[#allocation4] sm:$0xff] %v291
        $region44: #{tpu_custom_call.1} parent=27 // pred_fallthru
          _
        %p293 = scmp.gt.s32.totalorder %s275, 5000
        // Predicated region
        $region45: #{tpu_custom_call.1} parent=27 // pred_check
          %p294 = pneg %p293
        $region46: #{tpu_custom_call.1} parent=27 // pred_check_branch
          %296 = sbr.rel (%p294) target = $region48
        $region47: #{tpu_custom_call.1} parent=27 // pred_region
          %v297 = vlaneseq
          %v298 = vshrl.u32 %v297, 7
          %v299 = vlaneseq
          %v300 = vand.u32 %v299, 127
          %v301 = vmul.u32 %v298, 128
          %v302 = vstv %s274
          %v303 = vadd.s32 %v302, %v301
          %v304 = vadd.s32 %v303, %v300
          %vm305 = vcmp.lt.s32.totalorder %v304, 5000
          %v306 = vsel %vm305, %v271, 0.0
          %v307 = vsel %vm305, %v252, 0.0
          %v308 = vld [vmem:[#allocation2] sm:$0xff]
          %v309 = vmul.f32 %v306, %v307
          %v310 = vadd.f32 %v309, 0.0
          %v311 = vadd.f32 %v308, %v310
          %312 = vst [vmem:[#allocation2] sm:$0xff] %v311
          %v313 = vld [vmem:[#allocation3] sm:$0xff]
          %v314 = vadd.f32 %v306, 0.0
          %v315 = vadd.f32 %v313, %v314
          %316 = vst [vmem:[#allocation3] sm:$0xff] %v315
          %v317 = vld [vmem:[#allocation4] sm:$0xff]
          %v318 = vadd.f32 %v307, 0.0
          %v319 = vadd.f32 %v317, %v318
          %320 = vst [vmem:[#allocation4] sm:$0xff] %v319
        $region48: #{tpu_custom_call.1} parent=27 // pred_fallthru
          _
        %p321 = scmp.eq.s32.totalorder %s27, 2
        // Predicated region
        $region49: #{tpu_custom_call.1} parent=27 // pred_check
          %p322 = pneg %p321
        $region50: #{tpu_custom_call.1} parent=27 // pred_check_branch
          %324 = sbr.rel (%p322) target = $region52
        $region51: #{tpu_custom_call.1} parent=27 // pred_region
          %v325 = vld [vmem:[#allocation2] sm:$0xff]
          %326 = vst [vmem:[%s235] sm:$0xff] %v325
          %v327 = vld [vmem:[#allocation3] sm:$0xff]
          %328 = vst [vmem:[%s235 + $0x8] sm:$0xff] %v327
          %v329 = vld [vmem:[#allocation4] sm:$0xff]
          %330 = vst [vmem:[%s235 + $0x10] sm:$0xff] %v329
        $region52: #{tpu_custom_call.1} parent=27 // pred_fallthru
          _
        %s331 = sand.u32 %s110, 1
        %s332 = scalar_lea.sflag [#allocation7], %s331
        %s333 = sand.u32 %s110, 1
        %s334 = smul.addr %s333, 24
        %s335 = scalar_lea.vmem [#allocation10], %s334
        // Predicated region
        $region53: #{tpu_custom_call.1} parent=27 // pred_check
          %p336 = pneg %p120
        $region54: #{tpu_custom_call.1} parent=27 // pred_check_branch
          %338 = sbr.rel (%p336) target = $region56
        $region55: #{tpu_custom_call.1} parent=27 // pred_region
          %340 = vsyncadd %s332, 0
          %s341 = smul.addr %s26, 3
          %s342 = smul.addr %s341, 8
          %s343 = scalar_lea.hbm %s2, %s342
          %s344 = sshll.u32 %s335, 4
          %s345 = int_to_ptr.vmem [resolvable:$true] %s344
          %s346 = sshll.u32 %s343, 4
          %s347 = int_to_ptr.hbm [resolvable:$true] %s346
          %352 = dma.vmem_to_hbm [thread:$0]  %s345, 384, %s347, %s332, 128, 128, 8
        $region56: #{tpu_custom_call.1} parent=27 // pred_fallthru
          _
      $region28: #{tpu_custom_call.1} parent=5 // pred_fallthru
        _
      %p353 = scmp.le.s32.totalorder 2, %s17
      // Predicated region
      $region57: #{tpu_custom_call.1} parent=5 // pred_check
        %p354 = pneg %p353
      $region58: #{tpu_custom_call.1} parent=5 // pred_check_branch
        %356 = sbr.rel (%p354) target = $region60
      $region59: #{tpu_custom_call.1} parent=5 // pred_region
        %s357 = ssub.s32 %s17, 2
        // Predicated region
        $region61: #{tpu_custom_call.1} parent=59 // pred_check
          %p358 = pneg %p126
        $region62: #{tpu_custom_call.1} parent=59 // pred_check_branch
          %360 = sbr.rel (%p358) target = $region64
        $region63: #{tpu_custom_call.1} parent=59 // pred_region
          %s361 = sand.u32 %s111, 1
          %s362 = scalar_lea.sflag [#allocation7], %s361
          %s363 = sand.u32 %s111, 1
          %s364 = smul.addr %s363, 24
          %s365 = scalar_lea.vmem [#allocation10], %s364
          %367 = dma.done %s362, 384
        $region64: #{tpu_custom_call.1} parent=59 // pred_fallthru
          _
      $region60: #{tpu_custom_call.1} parent=5 // pred_fallthru
        _
    $region6: #{tpu_custom_call.1} parent=1 // loop_footer
      %s21 = sadd.s32 1, %s17
    $region7: #{tpu_custom_call.1} parent=1 // loop_footer_branch
      %16 = sbr.rel target = $region3
    $region8: #{tpu_custom_call.1} parent=1 // loop_exit
      _
    %368 = vsyncpa [#allocation6], 1
    %s369 = scalar_lea.sflag [#allocation6], 1
    %370 = vsyncpa %s369, 1
    %371 = vsyncpa [#allocation9], 1
    %s372 = scalar_lea.sflag [#allocation9], 1
    %373 = vsyncpa %s372, 1
    %374 = vsyncpa [#allocation7], 1
    %s375 = scalar_lea.sflag [#allocation7], 1
    %376 = vsyncpa %s375, 1

</llo_original>
